<compile_context>
chip_gen: v7x
topology: tpu7x:2x2x1
jax: 0.10.0
libtpu: 0.0.40
codegen_flags: <defaults>
</compile_context>

<pallas_src>
import jax
import jax.numpy as jnp
from jax import lax
from jax.experimental import pallas as pl
from jax.experimental.pallas import tpu as pltpu

LANES = 128
SUBLANES = 8
TILE_ROWS = 4096  # 4096 * 128 * 4 B = 2 MiB per f32 input block


def _make_partial_sum_kernel(tile_rows, p_rows, rows_total, needs_tile_mask):
    """Kernel writing per-block partial sums of |o-l|/l.

    tile_rows       : rows per grid block (multiple of 8 or == full row extent)
    p_rows          : rows of the per-block partial output (8 when possible)
    rows_total      : number of valid 128-wide rows of the flattened input
    needs_tile_mask : True iff the last grid block is a partial tile
    """

    def _reduce(e):
        if tile_rows == p_rows:
            return e  # tiny input: no in-block reduction needed
        # (tile_rows,128) -> (tile_rows/8, 8, 128): each leading index is one
        # f32 vreg, so the axis-0 sum lowers to pure elementwise vreg adds.
        return jnp.sum(e.reshape(-1, p_rows, LANES), axis=0)

    def kernel(pred_ref, lab_ref, part_ref):
        # Cast on the vreg (free VPU work hidden under DMA) -> native dtype
        # travels over HBM, f32 math inside.
        p = pred_ref[...].astype(jnp.float32)
        l = lab_ref[...].astype(jnp.float32)

        # Divide -> EUP approx reciprocal + one Newton step (r*(2 - l*r)).
        # Leaves only subs/abs/muls/adds on the VALU; accuracy ~1e-7 relative.
        r = pl.reciprocal(l, approx=True)
        r = r * (2.0 - l * r)
        err = jnp.abs(p - l) * r

        if not needs_tile_mask:
            part_ref[0] = _reduce(err)
        else:
            i = pl.program_id(0)
            last = pl.num_programs(0) - 1

            @pl.when(i != last)
            def _():
                # Interior blocks: no masking work at all.
                part_ref[0] = _reduce(err)

            @pl.when(i == last)
            def _():
                # Final (partial) tile: rows past the logical end hold
                # undefined VMEM contents (possibly Inf/NaN after the divide).
                # Select them to 0 with where/vsel -- NOT a multiply, which
                # would propagate NaN into the sum.
                row = (lax.broadcasted_iota(jnp.int32, (tile_rows, LANES), 0)
                       + i * tile_rows)
                part_ref[0] = _reduce(jnp.where(row < rows_total, err, 0.0))

    return kernel


def loss_valid(outputs, label):
    """Pallas equivalent of Loss_valid.forward. Returns a float32 scalar."""
    assert outputs.shape == label.shape
    total_n = int(outputs.size)

    flat_p = outputs.reshape(-1)
    flat_l = label.reshape(-1)

    full_rows, rem = divmod(total_n, LANES)

    # Sub-128-element tail: tiny plain-JAX sum instead of a full-array
    # concatenate/pad (which would re-read + re-write both inputs in HBM).
    tail_sum = jnp.float32(0.0)
    if rem:
        tp = flat_p[full_rows * LANES:].astype(jnp.float32)
        tl = flat_l[full_rows * LANES:].astype(jnp.float32)
        tail_sum = jnp.sum(jnp.abs(tp - tl) / tl)

    if full_rows == 0:
        # Degenerate case: fewer than 128 elements total, pure JAX.
        return tail_sum / jnp.float32(total_n)

    body_n = full_rows * LANES
    # Prefix slice of a contiguous flat array + reshape: layout-preserving
    # (no concatenate; at worst XLA copies only the prefix, usually elided).
    pred2d = (flat_p[:body_n] if rem else flat_p).reshape(full_rows, LANES)
    lab2d = (flat_l[:body_n] if rem else flat_l).reshape(full_rows, LANES)

    rows = full_rows
    # Minimum sublane granularity for the native dtype's packed layout:
    # f32 -> 8, bf16/f16 -> 16, int8/fp8 -> 32.
    itemsize = jnp.dtype(outputs.dtype).itemsize
    sub = max(SUBLANES, 32 // max(itemsize, 1))

    if rows >= TILE_ROWS:
        tile_rows = TILE_ROWS
    elif rows >= sub:
        tile_rows = (rows // sub) * sub
    else:
        tile_rows = rows  # single block == full array extent (always legal)
    p_rows = SUBLANES if tile_rows % SUBLANES == 0 else tile_rows

    num_blocks = pl.cdiv(rows, tile_rows)
    needs_tile_mask = (rows % tile_rows) != 0

    partials = pl.pallas_call(
        _make_partial_sum_kernel(tile_rows, p_rows, rows, needs_tile_mask),
        out_shape=jax.ShapeDtypeStruct((num_blocks, p_rows, LANES), jnp.float32),
        grid_spec=pltpu.PrefetchScalarGridSpec(
            num_scalar_prefetch=0,
            grid=(num_blocks,),
            in_specs=[
                pl.BlockSpec((tile_rows, LANES), lambda i: (i, 0)),
                pl.BlockSpec((tile_rows, LANES), lambda i: (i, 0)),
            ],
            out_specs=pl.BlockSpec((1, p_rows, LANES), lambda i: (i, 0, 0)),
        ),
        compiler_params=pltpu.CompilerParams(
            # Independent partial sums per block -> lets v7x use both TCs.
            dimension_semantics=("parallel",),
            # ~8 MiB of double-buffered f32 input blocks + f32 temps; raise the
            # scoped limit above v5e's 16 MiB default, well under v7x physical.
            vmem_limit_bytes=32 * 1024 * 1024,
        ),
    )(pred2d, lab2d)

    # Tiny cross-block reduction + mean outside the kernel.
    return (jnp.sum(partials) + tail_sum) / jnp.float32(total_n)


if __name__ == "__main__":
    key = jax.random.PRNGKey(0)
    k1, k2 = jax.random.split(key)

    # Primary example: NCHW inputs (batch=2, channels=4, spatial=16x16) with
    # strictly positive labels (division semantics match the PyTorch module).
    shape = (2, 4, 16, 16)
    outputs = jax.random.uniform(k1, shape, jnp.float32, minval=0.1, maxval=1.0)
    label = jax.random.uniform(k2, shape, jnp.float32, minval=0.1, maxval=1.0)

    rrmse = jax.block_until_ready(loss_valid(outputs, label))
    ref = jnp.mean(jnp.abs(outputs - label) / label)
    # rtol loosened slightly (1e-4) to leave margin for the EUP approx
    # reciprocal + single Newton step (actual error ~1e-7..1e-5 relative).
    assert jnp.allclose(rrmse, ref, rtol=1e-4, atol=1e-6), (rrmse, ref)

    # Element count not a multiple of 128: exercises the plain-JAX tail path
    # plus a tiny single-row kernel body.
    k3, k4 = jax.random.split(k1)
    shape2 = (2, 3, 5, 7)
    o2 = jax.random.uniform(k3, shape2, jnp.float32, minval=0.1, maxval=1.0)
    l2 = jax.random.uniform(k4, shape2, jnp.float32, minval=0.1, maxval=1.0)
    r2 = jax.block_until_ready(loss_valid(o2, l2))
    ref2 = jnp.mean(jnp.abs(o2 - l2) / l2)
    assert jnp.allclose(r2, ref2, rtol=1e-4, atol=1e-6), (r2, ref2)

    # Multi-block grid with a partial final block: exercises the pl.when-gated
    # last-block masking path.
    k5, k6 = jax.random.split(k2)
    shape3 = (2, 31, 48, 48)
    o3 = jax.random.uniform(k5, shape3, jnp.float32, minval=0.1, maxval=1.0)
    l3 = jax.random.uniform(k6, shape3, jnp.float32, minval=0.1, maxval=1.0)
    r3 = jax.block_until_ready(loss_valid(o3, l3))
    ref3 = jnp.mean(jnp.abs(o3 - l3) / l3)
    assert jnp.allclose(r3, ref3, rtol=1e-4, atol=1e-6), (r3, ref3)

    # Native bf16 inputs: exercises the no-wrapper-upcast path (cast to f32
    # happens on-vreg inside the kernel).
    k7, k8 = jax.random.split(k3)
    ob = jax.random.uniform(k7, shape, jnp.float32, minval=0.1, maxval=1.0
                            ).astype(jnp.bfloat16)
    lb = jax.random.uniform(k8, shape, jnp.float32, minval=0.1, maxval=1.0
                            ).astype(jnp.bfloat16)
    rb = jax.block_until_ready(loss_valid(ob, lb))
    ob32, lb32 = ob.astype(jnp.float32), lb.astype(jnp.float32)
    refb = jnp.mean(jnp.abs(ob32 - lb32) / lb32)
    assert jnp.allclose(rb, refb, rtol=1e-4, atol=1e-6), (rb, refb)

    print("KERNEL_OK")
</pallas_src>

<mosaic_0001>
module attributes {stable_mosaic.version = 11 : i64} {
  func.func @kernel(%arg0: i32, %arg1: memref<16x128xf32, #tpu.memory_space<vmem>>, %arg2: memref<16x128xf32, #tpu.memory_space<vmem>>, %arg3: memref<1x8x128xf32, #tpu.memory_space<vmem>>) attributes {dimension_semantics = [#tpu.dimension_semantics<parallel>], iteration_bounds = array<i64: 1>, scalar_prefetch = 0 : i64, scratch_operands = 0 : i64, tpu.core_type = #tpu.core_type<tc>, window_params = [{transform_indices = @transform_0, window_bounds = array<i64: 16, 128>}, {transform_indices = @transform_1, window_bounds = array<i64: 16, 128>}, {transform_indices = @transform_2, window_bounds = array<i64: 1, 8, 128>}]} {
    %c0 = arith.constant 0 : index
    %c0_0 = arith.constant 0 : index
    %0 = vector.load %arg1[%c0, %c0_0] : memref<16x128xf32, #tpu.memory_space<vmem>>, vector<16x128xf32>
    %c0_1 = arith.constant 0 : index
    %c0_2 = arith.constant 0 : index
    %1 = vector.load %arg2[%c0_1, %c0_2] : memref<16x128xf32, #tpu.memory_space<vmem>>, vector<16x128xf32>
    %2 = tpu.reciprocal %1 {approx = true} : vector<16x128xf32> -> vector<16x128xf32>
    %3 = arith.mulf %1, %2 : vector<16x128xf32>
    %cst = arith.constant 2.000000e+00 : f32
    %4 = vector.broadcast %cst : f32 to vector<16x128xf32>
    %5 = arith.subf %4, %3 : vector<16x128xf32>
    %6 = arith.mulf %2, %5 : vector<16x128xf32>
    %7 = arith.subf %0, %1 : vector<16x128xf32>
    %8 = math.absf %7 : vector<16x128xf32>
    %9 = arith.mulf %8, %6 : vector<16x128xf32>
    %10 = vector.shape_cast %9 : vector<16x128xf32> to vector<2x8x128xf32>
    %cst_3 = arith.constant dense<0.000000e+00> : vector<8x128xf32>
    %11 = vector.multi_reduction <add>, %10, %cst_3 [0] : vector<2x8x128xf32> to vector<8x128xf32>
    %c0_4 = arith.constant 0 : index
    %c0_5 = arith.constant 0 : index
    %c0_6 = arith.constant 0 : index
    %12 = vector.load %arg3[%c0_4, %c0_5, %c0_6] : memref<1x8x128xf32, #tpu.memory_space<vmem>>, vector<1x8x128xf32>
    %13 = vector.shape_cast %12 : vector<1x8x128xf32> to vector<8x128xf32>
    %14 = vector.shape_cast %11 : vector<8x128xf32> to vector<1x8x128xf32>
    tpu.vector_store %arg3[%c0_4, %c0_5, %c0_6], %14 {strides = array<i32>} : memref<1x8x128xf32, #tpu.memory_space<vmem>>, vector<1x8x128xf32>,
    return
  }
  func.func @transform_0(%arg0: i32) -> (i32, i32) {
    %c0_i32 = arith.constant 0 : i32
    %c0_i32_0 = arith.constant 0 : i32
    return %arg0, %c0_i32 : i32, i32
  }
  func.func @transform_1(%arg0: i32) -> (i32, i32) {
    %c0_i32 = arith.constant 0 : i32
    %c0_i32_0 = arith.constant 0 : i32
    return %arg0, %c0_i32 : i32, i32
  }
  func.func @transform_2(%arg0: i32) -> (i32, i32, i32) {
    %c0_i32 = arith.constant 0 : i32
    %c0_i32_0 = arith.constant 0 : i32
    %c0_i32_1 = arith.constant 0 : i32
    return %arg0, %c0_i32, %c0_i32_0 : i32, i32, i32
  }
}

</mosaic_0001>

<llo_original>
// kernel: tpu_custom_call.1
$region0: #{tpu_custom_call.1}
  #allocation0 [shape = 'u32[]', space=smem, size = 0x4, offset = 0x4, fixed_abs, tag = 'smem constant byte address 0x4 - core index']
  #allocation1 [shape = 'u32[144,128]{1,0:T(1,128)}', space=vmem, size = 0x12000, scoped, tag = 'internal scratch']
  %s0 = inlined_call_operand.hbm [shape: f32[16,128], index: 0, kind: input, shape index: {}]
  %s1 = inlined_call_operand.hbm [shape: f32[16,128], index: 1, kind: input, shape index: {}]
  %s2 = inlined_call_operand.hbm [shape: f32[1,8,128], index: 2, kind: output, shape index: {}]
  %s3 = sld [smem:[#allocation0]]
  $region26: #{tpu_custom_call.1} parent=0
    _
  %s5 = ssub.s32 1, %s3
  %s6 = scalar_select 0, %s5, %s3
  $region1: #{tpu_custom_call.1} parent=0
    #allocation2 [shape = 'u8[8192]{0}', space=vmem, size = 0x2000, scoped, tag = 'input window, operand 0, single buffered']
    #allocation3 [shape = 's32[1]{0}', space=sflag, size = 0x4, scoped, tag = 'scoped memory for tpu_custom_call.1']
    #allocation4 [shape = 's32[1]{0}', space=sflag, size = 0x4, scoped, tag = 'scoped memory for tpu_custom_call.1']
    #allocation5 [shape = 'u8[8192]{0}', space=vmem, size = 0x2000, scoped, tag = 'input window, operand 1, single buffered']
    #allocation6 [shape = 's32[1]{0}', space=sflag, size = 0x4, scoped, tag = 'scoped memory for tpu_custom_call.1']
    #allocation7 [shape = 'u8[4096]{0}', space=vmem, size = 0x1000, scoped, tag = 'output window, operand 0, single buffered']
    %7 = vsyncpa [#allocation3], 0
    %8 = vsyncpa [#allocation6], 0
    %9 = vsyncpa [#allocation4], 0
    // Predicated region
    $region2: #{tpu_custom_call.1} parent=1 // pred_check
      _
    $region3: #{tpu_custom_call.1} parent=1 // pred_check_branch
      %11 = sbr.rel (0) target = $region5
    $region4: #{tpu_custom_call.1} parent=1 // pred_region
      %s13 = ssub.s32 256, 256
      %14 = vsyncadd [#allocation3], %s13
      %s15 = sshll.u32 [#allocation2], 4
      %s16 = int_to_ptr.vmem [resolvable:$true] %s15
      %21 = dma.hbm_to_vmem [thread:$0]  %s0, 256, %s16, [#allocation3], 128, 128, 8
    $region5: #{tpu_custom_call.1} parent=1 // pred_fallthru
      _
    // Predicated region
    $region6: #{tpu_custom_call.1} parent=1 // pred_check
      _
    $region7: #{tpu_custom_call.1} parent=1 // pred_check_branch
      %23 = sbr.rel (0) target = $region9
    $region8: #{tpu_custom_call.1} parent=1 // pred_region
      %s25 = ssub.s32 256, 256
      %26 = vsyncadd [#allocation6], %s25
      %s27 = sshll.u32 [#allocation5], 4
      %s28 = int_to_ptr.vmem [resolvable:$true] %s27
      %33 = dma.hbm_to_vmem [thread:$0]  %s1, 256, %s28, [#allocation6], 128, 128, 8
    $region9: #{tpu_custom_call.1} parent=1 // pred_fallthru
      _
    // Predicated region
    $region10: #{tpu_custom_call.1} parent=1 // pred_check
      _
    $region11: #{tpu_custom_call.1} parent=1 // pred_check_branch
      %35 = sbr.rel (0) target = $region13
    $region12: #{tpu_custom_call.1} parent=1 // pred_region
      %36 = dma.done [#allocation3], 256
    $region13: #{tpu_custom_call.1} parent=1 // pred_fallthru
      _
    // Predicated region
    $region14: #{tpu_custom_call.1} parent=1 // pred_check
      _
    $region15: #{tpu_custom_call.1} parent=1 // pred_check_branch
      %38 = sbr.rel (0) target = $region17
    $region16: #{tpu_custom_call.1} parent=1 // pred_region
      %39 = dma.done [#allocation6], 256
    $region17: #{tpu_custom_call.1} parent=1 // pred_fallthru
      _
    %v40 = vld [vmem:[#allocation2] sm:$0xff]
    %v41 = vld [vmem:[#allocation2 + $0x8] sm:$0xff]
    %v42 = vld [vmem:[#allocation5] sm:$0xff]
    %v43 = vld [vmem:[#allocation5 + $0x8] sm:$0xff]
    %v44 = vrcp.pop %v42
    %v45 = vrcp.pop %v43
    %v46 = vmul.f32 %v42, %v44
    %v47 = vmul.f32 %v43, %v45
    %v48 = vsub.f32 2.0, %v46
    %v49 = vsub.f32 2.0, %v47
    %v50 = vmul.f32 %v44, %v48
    %v51 = vmul.f32 %v45, %v49
    %v52 = vsub.f32 %v40, %v42
    %v53 = vsub.f32 %v41, %v43
    %v54 = vand.u32 2147483647, %v52
    %v55 = vand.u32 2147483647, %v53
    %v56 = vmul.f32 %v54, %v50
    %v57 = vmul.f32 %v55, %v51
    %v58 = vadd.f32 %v56, %v57
    %59 = vst [vmem:[#allocation7] sm:$0xff] %v58
    // Predicated region
    $region18: #{tpu_custom_call.1} parent=1 // pred_check
      _
    $region19: #{tpu_custom_call.1} parent=1 // pred_check_branch
      %61 = sbr.rel (0) target = $region21
    $region20: #{tpu_custom_call.1} parent=1 // pred_region
      %s63 = ssub.s32 128, 128
      %64 = vsyncadd [#allocation4], %s63
      %s66 = sshll.u32 [#allocation7], 4
      %s67 = int_to_ptr.vmem [resolvable:$true] %s66
      %69 = dma.vmem_to_hbm [thread:$0]  %s67, 128, %s2, [#allocation4]
    $region21: #{tpu_custom_call.1} parent=1 // pred_fallthru
      _
    // Predicated region
    $region22: #{tpu_custom_call.1} parent=1 // pred_check
      _
    $region23: #{tpu_custom_call.1} parent=1 // pred_check_branch
      %71 = sbr.rel (0) target = $region25
    $region24: #{tpu_custom_call.1} parent=1 // pred_region
      %72 = dma.done [#allocation4], 128
    $region25: #{tpu_custom_call.1} parent=1 // pred_fallthru
      _
    %73 = vsyncpa [#allocation3], 1
    %74 = vsyncpa [#allocation6], 1
    %75 = vsyncpa [#allocation4], 1

</llo_original>
